<compile_context>
chip_gen: v5e
topology: v5e:2x2
jax: 0.10.0
libtpu: 0.0.40
codegen_flags: <defaults>
</compile_context>

<pallas_src>
import math

import jax
import jax.numpy as jnp
from jax.experimental import pallas as pl
from jax.experimental.pallas import tpu as pltpu


# ----------------------------------------------------------------------------
# Sinusoidal projections (glue — elementwise, tiny)
# ----------------------------------------------------------------------------
def diffusers_timestep_embedding(timesteps, dim, flip_sin_to_cos=False,
                                 downscale_freq_shift=0.0, max_period=10000.0):
    """diffusers Timesteps / get_timestep_embedding (used for `time_proj`)."""
    half = dim // 2
    exponent = (-math.log(max_period)
                * jnp.arange(half, dtype=jnp.float32)
                / (half - downscale_freq_shift))
    freqs = jnp.exp(exponent)
    args = timesteps[:, None].astype(jnp.float32) * freqs[None, :]
    emb = jnp.concatenate([jnp.sin(args), jnp.cos(args)], axis=-1)
    if flip_sin_to_cos:
        emb = jnp.concatenate([emb[:, half:], emb[:, :half]], axis=-1)
    if dim % 2 == 1:
        emb = jnp.pad(emb, ((0, 0), (0, 1)))
    return emb


def get_datetime_embedding(timesteps, embedding_dim, flip_sin_to_cos=False):
    """Faithful port of model/time_emb.py::get_datetime_embedding
    (frequencies are arange(half_dim); downscale_freq_shift is unused there)."""
    half = embedding_dim // 2
    freqs = jnp.arange(half, dtype=jnp.float32)
    args = timesteps[:, None].astype(jnp.float32) * freqs[None, :]
    emb = jnp.concatenate([jnp.sin(args), jnp.cos(args)], axis=-1)
    if flip_sin_to_cos:
        emb = jnp.concatenate([emb[:, half:], emb[:, :half]], axis=-1)
    if embedding_dim % 2 == 1:
        emb = jnp.pad(emb, ((0, 0), (0, 1)))
    return emb


# ----------------------------------------------------------------------------
# Fused Pallas kernel: time/day/hour TimestepEmbedding MLPs  +  conv_in
# Single grid step — no pl.when gating, no per-batch loop.
# ----------------------------------------------------------------------------
def _fused_wrapper_kernel(xcat_ref, w1_ref, b1_ref, w2_ref, b2_ref,
                          patches_ref, wct_ref, bc_ref,
                          emb_ref, conv_ref):
    # ---- (a) fused MLPs: block-diag K=512 matmul -> SiLU -> K=384 matmul ----
    h = jnp.dot(xcat_ref[...], w1_ref[...],
                preferred_element_type=jnp.float32) + b1_ref[...]
    h = h * jax.nn.sigmoid(h)                       # SiLU, f32 on the VPU/EUP
    h = h.astype(w2_ref.dtype)                      # bf16 operand path (f32 acc)
    emb = jnp.dot(h, w2_ref[...],
                  preferred_element_type=jnp.float32) + b2_ref[...]
    # matches: emb = time_embedding(t_emb) + h_emb + d_emb  (b2's pre-summed)
    emb_ref[...] = emb.astype(emb_ref.dtype)

    # ---- (b) conv_in, batch-folded: (Cout, 9Cin) @ (9Cin, B*H*W) ------------
    acc = jnp.dot(wct_ref[...], patches_ref[...],
                  preferred_element_type=jnp.float32)
    conv_ref[...] = (acc + bc_ref[...]).astype(conv_ref.dtype)


# ----------------------------------------------------------------------------
# DiffusionWrapper (crossattn conditioning path)
# ----------------------------------------------------------------------------
class DiffusionWrapperPallas:
    """Small-shape analogue of DiffusionWrapper(conditioning_key='crossattn').

    block_out_channels[0] = C0  =>  t_emb dim = C0, time_embed_dim = 4*C0.
    day/hour sinusoidal dims are fixed by the module at 366 / 24.
    `compute_dtype` defaults to bfloat16 (MXU-native operands on v5e/v6e/v7x;
    SiLU, biases and accumulation stay f32); pass jnp.float32 to match the
    PyTorch module bit-for-bit at f32 precision.
    """

    DAY_DIM = 366
    HOUR_DIM = 24

    def __init__(self, latent_ch=4, c0=32, conditioning_key="crossattn",
                 compute_dtype=jnp.bfloat16, key=jax.random.PRNGKey(0)):
        assert conditioning_key in [None, "concat", "crossattn", "hybrid", "adm"]
        self.latent_ch = latent_ch
        self.conditioning_key = conditioning_key
        self.c0 = c0
        self.hidden = 4 * c0                              # 128
        self.compute_dtype = compute_dtype

        # packed-K layout of the concatenated sinusoidal inputs
        self.k1 = c0 + self.DAY_DIM + self.HOUR_DIM       # 422
        self.k1_pad = ((self.k1 + 127) // 128) * 128      # 512 (lane-aligned)

        ks = jax.random.split(key, 16)

        def lin(k, fan_in, fan_out):
            return 0.02 * jax.random.normal(k, (fan_in, fan_out), jnp.float32)

        def mlp(k1, k2, k3, k4, in_dim):
            return dict(
                w1=lin(k1, in_dim, self.hidden),
                b1=0.02 * jax.random.normal(k2, (1, self.hidden), jnp.float32),
                w2=lin(k3, self.hidden, self.hidden),
                b2=0.02 * jax.random.normal(k4, (1, self.hidden), jnp.float32),
            )

        # raw per-branch params (kept for the pure-JAX reference)
        self.emb_params = dict(
            time=mlp(ks[0], ks[1], ks[2], ks[3], self.c0),
            day=mlp(ks[4], ks[5], ks[6], ks[7], self.DAY_DIM),
            hour=mlp(ks[8], ks[9], ks[10], ks[11], self.HOUR_DIM),
        )

        # ---- pack the 12 MLP tensors into 4 kernel operands ----------------
        hid = self.hidden
        order = (("time", self.c0), ("day", self.DAY_DIM), ("hour", self.HOUR_DIM))
        w1 = jnp.zeros((self.k1_pad, 3 * hid), jnp.float32)     # block-diagonal
        off = 0
        for col, (name, fan_in) in enumerate(order):
            w1 = w1.at[off:off + fan_in, col * hid:(col + 1) * hid].set(
                self.emb_params[name]["w1"])
            off += fan_in
        self.w1_pack = w1.astype(compute_dtype)                  # (512, 384)
        self.b1_pack = jnp.concatenate(
            [self.emb_params[n]["b1"] for n, _ in order], axis=-1)  # (1, 384) f32
        self.w2_pack = jnp.concatenate(
            [self.emb_params[n]["w2"] for n, _ in order],
            axis=0).astype(compute_dtype)                        # (384, 128)
        self.b2_pack = (self.emb_params["time"]["b2"]
                        + self.emb_params["day"]["b2"]
                        + self.emb_params["hour"]["b2"])         # (1, 128) pre-summed

        # conv_in: Conv2d(latent_ch, C0, 3, padding=1)   (stored HWIO)
        self.conv_w = 0.02 * jax.random.normal(
            ks[12], (3, 3, latent_ch, c0), jnp.float32)
        self.conv_b = 0.02 * jax.random.normal(ks[13], (c0,), jnp.float32)
        # transposed flat kernel (Cout, 9*Cin), row/col order (dh, dw, cin)
        self.conv_wt = self.conv_w.reshape(9 * latent_ch, c0).T.astype(compute_dtype)
        self.conv_bc = self.conv_b.reshape(c0, 1)                # (Cout, 1) f32

    # ------------------------------------------------------------------ call
    def _pallas_forward(self, x_cat, patches, B, H, W):
        Cin = self.latent_ch
        Cout = self.c0
        hid3 = 3 * self.hidden
        BHW = B * H * W

        in_specs = [
            pl.BlockSpec((B, self.k1_pad), lambda i: (0, 0)),       # x_cat
            pl.BlockSpec((self.k1_pad, hid3), lambda i: (0, 0)),    # W1 block-diag
            pl.BlockSpec((1, hid3), lambda i: (0, 0)),              # b1 concat
            pl.BlockSpec((hid3, self.hidden), lambda i: (0, 0)),    # W2 stacked
            pl.BlockSpec((1, self.hidden), lambda i: (0, 0)),       # b2 pre-summed
            pl.BlockSpec((9 * Cin, BHW), lambda i: (0, 0)),         # im2col patches
            pl.BlockSpec((Cout, 9 * Cin), lambda i: (0, 0)),        # conv W^T
            pl.BlockSpec((Cout, 1), lambda i: (0, 0)),              # conv bias col
        ]
        out_specs = (
            pl.BlockSpec((B, self.hidden), lambda i: (0, 0)),       # emb
            pl.BlockSpec((Cout, BHW), lambda i: (0, 0)),            # conv (lane-dense)
        )
        out_shape = (
            jax.ShapeDtypeStruct((B, self.hidden), jnp.float32),
            jax.ShapeDtypeStruct((Cout, BHW), jnp.float32),
        )
        return pl.pallas_call(
            _fused_wrapper_kernel,
            grid=(1,),
            in_specs=in_specs,
            out_specs=out_specs,
            out_shape=out_shape,
            compiler_params=pltpu.CompilerParams(
                dimension_semantics=("arbitrary",)),
        )(x_cat, self.w1_pack, self.b1_pack, self.w2_pack, self.b2_pack,
          patches, self.conv_wt, self.conv_bc)

    def forward(self, x, t, day, hour, c_crossattn=None):
        assert self.conditioning_key == "crossattn"
        if c_crossattn is not None:
            cc = jnp.concatenate(c_crossattn, axis=1)  # cross-attn context
            del cc  # TODO(synk): consumed only by the untranslated attention blocks
        B, Cin, H, W = x.shape
        assert Cin == self.latent_ch

        # timesteps.expand(B), day.expand(B), hour.expand(B)
        ts = jnp.broadcast_to(jnp.asarray(t, jnp.float32).reshape(-1), (B,))
        dy = jnp.broadcast_to(jnp.asarray(day, jnp.float32).reshape(-1), (B,))
        hr = jnp.broadcast_to(jnp.asarray(hour, jnp.float32).reshape(-1), (B,))

        # flip_sin_to_cos=False, freq_shift=0 (UNet2DConditionModel defaults)
        t_emb = diffusers_timestep_embedding(ts, self.c0, flip_sin_to_cos=False,
                                             downscale_freq_shift=0.0)
        d_emb = get_datetime_embedding(dy, self.DAY_DIM, flip_sin_to_cos=False)
        h_emb = get_datetime_embedding(hr, self.HOUR_DIM, flip_sin_to_cos=False)
        # concatenated + zero-padded K input for the block-diagonal first layer
        x_cat = jnp.concatenate([t_emb, d_emb, h_emb], axis=-1)          # (B, 422)
        x_cat = jnp.pad(x_cat, ((0, 0), (0, self.k1_pad - self.k1)))
        x_cat = x_cat.astype(self.compute_dtype)

        # Host-side im2col: lane-dense (9*Cin, B*H*W) patch matrix, rows ordered
        # (dh, dw, cin) to match conv_wt, columns ordered (b, h, w).
        x_pad = jnp.pad(x, ((0, 0), (0, 0), (1, 1), (1, 1)))             # NCHW halo
        taps = [x_pad[:, :, dh:dh + H, dw:dw + W]                        # (B,Cin,H,W)
                for dh in range(3) for dw in range(3)]
        patches = jnp.stack(taps, axis=0)                                # (9,B,Cin,H,W)
        patches = jnp.transpose(patches, (0, 2, 1, 3, 4)).reshape(
            9 * Cin, B * H * W).astype(self.compute_dtype)

        emb, conv = self._pallas_forward(x_cat, patches, B, H, W)
        # (Cout, B*H*W) -> (B, Cout, H, W): cheap small transpose in glue
        sample = jnp.transpose(conv.reshape(self.c0, B, H, W), (1, 0, 2, 3))
        # TODO(synk): down_blocks / mid_block / up_blocks / conv_norm_out / conv_out
        return emb, sample


# ----------------------------------------------------------------------------
# Pure-JAX references (for a correctness sanity check)
# ----------------------------------------------------------------------------
def _ref_emb(t_emb, d_emb, h_emb, p):
    def mlp(x, q):
        h = x @ q["w1"] + q["b1"]
        h = h * jax.nn.sigmoid(h)
        return h @ q["w2"] + q["b2"]
    return mlp(t_emb, p["time"]) + mlp(h_emb, p["hour"]) + mlp(d_emb, p["day"])


def _ref_conv(x_nchw, w_hwio, b):
    out = jax.lax.conv_general_dilated(
        x_nchw, w_hwio, window_strides=(1, 1), padding="SAME",
        dimension_numbers=("NCHW", "HWIO", "NCHW"))
    return out + b.reshape(1, -1, 1, 1)


# ----------------------------------------------------------------------------
if __name__ == "__main__":
    key = jax.random.PRNGKey(0)
    k_x, k_cc = jax.random.split(key, 2)

    B, C, H, W = 2, 4, 16, 16
    x = jax.random.normal(k_x, (B, C, H, W), jnp.float32)
    t = jnp.float32(7.0)
    day = jnp.float32(123.0)
    hour = jnp.float32(5.0)
    c_crossattn = [jax.random.normal(k_cc, (B, 8, 32), jnp.float32)]

    # f32 model for the tight-tolerance correctness check
    model = DiffusionWrapperPallas(latent_ch=C, c0=32,
                                   conditioning_key="crossattn",
                                   compute_dtype=jnp.float32,
                                   key=jax.random.PRNGKey(0))

    emb, sample = model.forward(x, t, day, hour, c_crossattn=c_crossattn)
    emb = jax.block_until_ready(emb)
    sample = jax.block_until_ready(sample)

    # sanity check vs pure-JAX reference
    ts = jnp.full((B,), t)
    dy = jnp.full((B,), day)
    hr = jnp.full((B,), hour)
    t_emb = diffusers_timestep_embedding(ts, model.c0)
    d_emb = get_datetime_embedding(dy, model.DAY_DIM)
    h_emb = get_datetime_embedding(hr, model.HOUR_DIM)
    emb_ref = _ref_emb(t_emb, d_emb, h_emb, model.emb_params)
    conv_ref = _ref_conv(x, model.conv_w, model.conv_b)

    assert emb.shape == (B, 4 * model.c0)
    assert sample.shape == (B, model.c0, H, W)
    assert jnp.allclose(emb, emb_ref, rtol=1e-4, atol=1e-4)
    assert jnp.allclose(sample, conv_ref, rtol=1e-4, atol=1e-4)

    # default bf16-operand / f32-accumulate model (v5e / v6e / v7x MXU-native path)
    model_bf16 = DiffusionWrapperPallas(latent_ch=C, c0=32,
                                        conditioning_key="crossattn",
                                        key=jax.random.PRNGKey(0))
    emb16, sample16 = model_bf16.forward(x, t, day, hour,
                                         c_crossattn=c_crossattn)
    emb16 = jax.block_until_ready(emb16)
    sample16 = jax.block_until_ready(sample16)
    assert jnp.allclose(emb16, emb_ref, rtol=5e-2, atol=5e-2)
    assert jnp.allclose(sample16, conv_ref, rtol=5e-2, atol=5e-2)

    print("KERNEL_OK")
</pallas_src>

<mosaic_0001>
module attributes {stable_mosaic.version = 11 : i64} {
  func.func @_fused_wrapper_kernel(%arg0: i32, %arg1: memref<2x512xf32, #tpu.memory_space<vmem>>, %arg2: memref<512x384xf32, #tpu.memory_space<vmem>>, %arg3: memref<1x384xf32, #tpu.memory_space<vmem>>, %arg4: memref<384x128xf32, #tpu.memory_space<vmem>>, %arg5: memref<1x128xf32, #tpu.memory_space<vmem>>, %arg6: memref<36x512xf32, #tpu.memory_space<vmem>>, %arg7: memref<32x36xf32, #tpu.memory_space<vmem>>, %arg8: memref<32x1xf32, #tpu.memory_space<vmem>>, %arg9: memref<2x128xf32, #tpu.memory_space<vmem>>, %arg10: memref<32x512xf32, #tpu.memory_space<vmem>>) attributes {dimension_semantics = [#tpu.dimension_semantics<arbitrary>], iteration_bounds = array<i64: 1>, scalar_prefetch = 0 : i64, scratch_operands = 0 : i64, tpu.core_type = #tpu.core_type<tc>, window_params = [{pipeline_mode = #tpu.pipeline_mode<synchronous>, transform_indices = @transform_0, window_bounds = array<i64: 2, 512>}, {pipeline_mode = #tpu.pipeline_mode<synchronous>, transform_indices = @transform_1, window_bounds = array<i64: 512, 384>}, {pipeline_mode = #tpu.pipeline_mode<synchronous>, transform_indices = @transform_2, window_bounds = array<i64: 1, 384>}, {pipeline_mode = #tpu.pipeline_mode<synchronous>, transform_indices = @transform_3, window_bounds = array<i64: 384, 128>}, {pipeline_mode = #tpu.pipeline_mode<synchronous>, transform_indices = @transform_4, window_bounds = array<i64: 1, 128>}, {pipeline_mode = #tpu.pipeline_mode<synchronous>, transform_indices = @transform_5, window_bounds = array<i64: 36, 512>}, {pipeline_mode = #tpu.pipeline_mode<synchronous>, transform_indices = @transform_6, window_bounds = array<i64: 32, 36>}, {pipeline_mode = #tpu.pipeline_mode<synchronous>, transform_indices = @transform_7, window_bounds = array<i64: 32, 1>}, {pipeline_mode = #tpu.pipeline_mode<synchronous>, transform_indices = @transform_8, window_bounds = array<i64: 2, 128>}, {pipeline_mode = #tpu.pipeline_mode<synchronous>, transform_indices = @transform_9, window_bounds = array<i64: 32, 512>}]} {
    %c0 = arith.constant 0 : index
    %c0_0 = arith.constant 0 : index
    %0 = vector.load %arg1[%c0, %c0_0] : memref<2x512xf32, #tpu.memory_space<vmem>>, vector<2x512xf32>
    %c0_1 = arith.constant 0 : index
    %c0_2 = arith.constant 0 : index
    %1 = vector.load %arg2[%c0_1, %c0_2] : memref<512x384xf32, #tpu.memory_space<vmem>>, vector<512x384xf32>
    %cst = arith.constant dense<0.000000e+00> : vector<2x384xf32>
    %2 = tpu.matmul %0, %1, %cst {dimension_numbers = #tpu.dot_dimension_numbers<[1], [0], [0], [1], [0, 0, 1, 1], [], []>} : vector<2x512xf32>, vector<512x384xf32>, vector<2x384xf32> -> vector<2x384xf32>
    %c0_3 = arith.constant 0 : index
    %c0_4 = arith.constant 0 : index
    %3 = vector.load %arg3[%c0_3, %c0_4] : memref<1x384xf32, #tpu.memory_space<vmem>>, vector<1x384xf32>
    %4 = vector.broadcast %3 : vector<1x384xf32> to vector<2x384xf32>
    %5 = arith.addf %2, %4 : vector<2x384xf32>
    %6 = arith.negf %5 : vector<2x384xf32>
    %7 = math.exp %6 : vector<2x384xf32>
    %cst_5 = arith.constant 1.000000e+00 : f32
    %8 = vector.broadcast %cst_5 : f32 to vector<2x384xf32>
    %9 = arith.addf %8, %7 : vector<2x384xf32>
    %10 = arith.divf %8, %9 : vector<2x384xf32>
    %11 = arith.mulf %5, %10 : vector<2x384xf32>
    %c0_6 = arith.constant 0 : index
    %c0_7 = arith.constant 0 : index
    %12 = vector.load %arg4[%c0_6, %c0_7] : memref<384x128xf32, #tpu.memory_space<vmem>>, vector<384x128xf32>
    %cst_8 = arith.constant dense<0.000000e+00> : vector<2x128xf32>
    %13 = tpu.matmul %11, %12, %cst_8 {dimension_numbers = #tpu.dot_dimension_numbers<[1], [0], [0], [1], [0, 0, 1, 1], [], []>} : vector<2x384xf32>, vector<384x128xf32>, vector<2x128xf32> -> vector<2x128xf32>
    %c0_9 = arith.constant 0 : index
    %c0_10 = arith.constant 0 : index
    %14 = vector.load %arg5[%c0_9, %c0_10] : memref<1x128xf32, #tpu.memory_space<vmem>>, vector<1x128xf32>
    %15 = vector.broadcast %14 : vector<1x128xf32> to vector<2x128xf32>
    %16 = arith.addf %13, %15 : vector<2x128xf32>
    %c0_11 = arith.constant 0 : index
    %c0_12 = arith.constant 0 : index
    %17 = vector.load %arg9[%c0_11, %c0_12] : memref<2x128xf32, #tpu.memory_space<vmem>>, vector<2x128xf32>
    tpu.vector_store %arg9[%c0_11, %c0_12], %16 {strides = array<i32>} : memref<2x128xf32, #tpu.memory_space<vmem>>, vector<2x128xf32>,
    %c0_13 = arith.constant 0 : index
    %c0_14 = arith.constant 0 : index
    %18 = vector.load %arg7[%c0_13, %c0_14] : memref<32x36xf32, #tpu.memory_space<vmem>>, vector<32x36xf32>
    %c0_15 = arith.constant 0 : index
    %c0_16 = arith.constant 0 : index
    %19 = vector.load %arg6[%c0_15, %c0_16] : memref<36x512xf32, #tpu.memory_space<vmem>>, vector<36x512xf32>
    %cst_17 = arith.constant dense<0.000000e+00> : vector<32x512xf32>
    %20 = tpu.matmul %18, %19, %cst_17 {dimension_numbers = #tpu.dot_dimension_numbers<[1], [0], [0], [1], [0, 0, 1, 1], [], []>} : vector<32x36xf32>, vector<36x512xf32>, vector<32x512xf32> -> vector<32x512xf32>
    %c0_18 = arith.constant 0 : index
    %c0_19 = arith.constant 0 : index
    %21 = vector.load %arg8[%c0_18, %c0_19] : memref<32x1xf32, #tpu.memory_space<vmem>>, vector<32x1xf32>
    %22 = vector.broadcast %21 : vector<32x1xf32> to vector<32x512xf32>
    %23 = arith.addf %20, %22 : vector<32x512xf32>
    %c0_20 = arith.constant 0 : index
    %c0_21 = arith.constant 0 : index
    %24 = vector.load %arg10[%c0_20, %c0_21] : memref<32x512xf32, #tpu.memory_space<vmem>>, vector<32x512xf32>
    tpu.vector_store %arg10[%c0_20, %c0_21], %23 {strides = array<i32>} : memref<32x512xf32, #tpu.memory_space<vmem>>, vector<32x512xf32>,
    return
  }
  func.func @transform_0(%arg0: i32) -> (i32, i32) {
    %c0_i32 = arith.constant 0 : i32
    %c0_i32_0 = arith.constant 0 : i32
    %c0_i32_1 = arith.constant 0 : i32
    return %c0_i32, %c0_i32_0 : i32, i32
  }
  func.func @transform_1(%arg0: i32) -> (i32, i32) {
    %c0_i32 = arith.constant 0 : i32
    %c0_i32_0 = arith.constant 0 : i32
    %c0_i32_1 = arith.constant 0 : i32
    return %c0_i32, %c0_i32_0 : i32, i32
  }
  func.func @transform_2(%arg0: i32) -> (i32, i32) {
    %c0_i32 = arith.constant 0 : i32
    %c0_i32_0 = arith.constant 0 : i32
    %c0_i32_1 = arith.constant 0 : i32
    return %c0_i32, %c0_i32_0 : i32, i32
  }
  func.func @transform_3(%arg0: i32) -> (i32, i32) {
    %c0_i32 = arith.constant 0 : i32
    %c0_i32_0 = arith.constant 0 : i32
    %c0_i32_1 = arith.constant 0 : i32
    return %c0_i32, %c0_i32_0 : i32, i32
  }
  func.func @transform_4(%arg0: i32) -> (i32, i32) {
    %c0_i32 = arith.constant 0 : i32
    %c0_i32_0 = arith.constant 0 : i32
    %c0_i32_1 = arith.constant 0 : i32
    return %c0_i32, %c0_i32_0 : i32, i32
  }
  func.func @transform_5(%arg0: i32) -> (i32, i32) {
    %c0_i32 = arith.constant 0 : i32
    %c0_i32_0 = arith.constant 0 : i32
    %c0_i32_1 = arith.constant 0 : i32
    return %c0_i32, %c0_i32_0 : i32, i32
  }
  func.func @transform_6(%arg0: i32) -> (i32, i32) {
    %c0_i32 = arith.constant 0 : i32
    %c0_i32_0 = arith.constant 0 : i32
    %c0_i32_1 = arith.constant 0 : i32
    return %c0_i32, %c0_i32_0 : i32, i32
  }
  func.func @transform_7(%arg0: i32) -> (i32, i32) {
    %c0_i32 = arith.constant 0 : i32
    %c0_i32_0 = arith.constant 0 : i32
    %c0_i32_1 = arith.constant 0 : i32
    return %c0_i32, %c0_i32_0 : i32, i32
  }
  func.func @transform_8(%arg0: i32) -> (i32, i32) {
    %c0_i32 = arith.constant 0 : i32
    %c0_i32_0 = arith.constant 0 : i32
    %c0_i32_1 = arith.constant 0 : i32
    return %c0_i32, %c0_i32_0 : i32, i32
  }
  func.func @transform_9(%arg0: i32) -> (i32, i32) {
    %c0_i32 = arith.constant 0 : i32
    %c0_i32_0 = arith.constant 0 : i32
    %c0_i32_1 = arith.constant 0 : i32
    return %c0_i32, %c0_i32_0 : i32, i32
  }
}

</mosaic_0001>

<llo_original>
// kernel: tpu_custom_call.1
$region0: #{tpu_custom_call.1}
  #allocation0 [shape = 'u32[]', space=smem, size = 0x4, offset = 0x4, fixed_abs, tag = 'smem constant byte address 0x4 - core index']
  #allocation1 [shape = 'u32[72,128]{1,0:T(1,128)}', space=vmem, size = 0x9000, scoped, tag = 'internal scratch']
  %s0 = inlined_call_operand.hbm [shape: f32[2,512], index: 0, kind: input, shape index: {}]
  %s1 = inlined_call_operand.hbm [shape: f32[512,384], index: 1, kind: input, shape index: {}]
  %s2 = inlined_call_operand.hbm [shape: f32[1,384], index: 2, kind: input, shape index: {}]
  %s3 = inlined_call_operand.hbm [shape: f32[384,128], index: 3, kind: input, shape index: {}]
  %s4 = inlined_call_operand.vmem [shape: f32[1,128], index: 4, kind: input, shape index: {}]
  %s5 = inlined_call_operand.hbm [shape: f32[36,512], index: 5, kind: input, shape index: {}]
  %s6 = inlined_call_operand.vmem [shape: f32[32,36], index: 6, kind: input, shape index: {}]
  %s7 = inlined_call_operand.vmem [shape: f32[32,1], index: 7, kind: input, shape index: {}]
  %s8 = inlined_call_operand.hbm [shape: f32[2,128], index: 8, kind: output, shape index: {0}]
  %s9 = inlined_call_operand.hbm [shape: f32[32,512], index: 9, kind: output, shape index: {1}]
  %10 = xla_tuple %s8, %s9
  %s11 = sld [smem:[#allocation0]]
  $region70: #{tpu_custom_call.1} parent=0
    _
  %s13 = ssub.s32 1, %s11
  %s14 = scalar_select 0, %s13, %s11
  $region1: #{tpu_custom_call.1} parent=0
    #allocation2 [shape = 'u8[4096]{0}', space=vmem, size = 0x1000, scoped, tag = 'input window, operand 0, single buffered']
    #allocation3 [shape = 's32[1]{0}', space=sflag, size = 0x4, scoped, tag = 'scoped memory for tpu_custom_call.1']
    #allocation4 [shape = 's32[1]{0}', space=sflag, size = 0x4, scoped, tag = 'scoped memory for tpu_custom_call.1']
    #allocation5 [shape = 'u8[786432]{0}', space=vmem, size = 0xc0000, scoped, tag = 'input window, operand 1, single buffered']
    #allocation6 [shape = 's32[1]{0}', space=sflag, size = 0x4, scoped, tag = 'scoped memory for tpu_custom_call.1']
    #allocation7 [shape = 'u8[1536]{0}', space=vmem, size = 0x800, scoped, tag = 'input window, operand 2, single buffered']
    #allocation8 [shape = 'u8[196608]{0}', space=vmem, size = 0x30000, scoped, tag = 'input window, operand 3, single buffered']
    #allocation9 [shape = 's32[1]{0}', space=sflag, size = 0x4, scoped, tag = 'scoped memory for tpu_custom_call.1']
    #allocation10 [shape = 'u8[81920]{0}', space=vmem, size = 0x14000, scoped, tag = 'input window, operand 5, single buffered']
    #allocation11 [shape = 'u8[1024]{0}', space=vmem, size = 0x400, scoped, tag = 'output window, operand 0, single buffered']
    #allocation12 [shape = 'u8[65536]{0}', space=vmem, size = 0x10000, scoped, tag = 'output window, operand 1, single buffered']
    #allocation13 [shape = 's32[1]{0}', space=sflag, size = 0x4, scoped, tag = 'scoped memory for tpu_custom_call.1']
    %15 = vsyncpa [#allocation3], 0
    %16 = vsyncpa [#allocation6], 0
    %17 = vsyncpa [#allocation9], 0
    %18 = vsyncpa [#allocation4], 0
    %19 = vsyncpa [#allocation13], 0
    // Predicated region
    $region2: #{tpu_custom_call.1} parent=1 // pred_check
      _
    $region3: #{tpu_custom_call.1} parent=1 // pred_check_branch
      %21 = sbr.rel (0) target = $region5
    $region4: #{tpu_custom_call.1} parent=1 // pred_region
      %23 = vsyncadd [#allocation3], 0
      %s25 = sshll.u32 %s0, 4
      %s26 = int_to_ptr.hbm [resolvable:$true] %s25
      %s27 = sshll.u32 [#allocation2], 4
      %s28 = int_to_ptr.vmem [resolvable:$true] %s27
      %30 = dma.hbm_to_vmem [thread:$0]  %s26, 128, %s28, [#allocation3]
    $region5: #{tpu_custom_call.1} parent=1 // pred_fallthru
      _
    // Predicated region
    $region6: #{tpu_custom_call.1} parent=1 // pred_check
      _
    $region7: #{tpu_custom_call.1} parent=1 // pred_check_branch
      %32 = sbr.rel (0) target = $region9
    $region8: #{tpu_custom_call.1} parent=1 // pred_region
      %34 = vsyncadd [#allocation6], 0
      %s35 = sshll.u32 %s1, 4
      %s36 = int_to_ptr.hbm [resolvable:$true] %s35
      %s37 = sshll.u32 [#allocation5], 4
      %s38 = int_to_ptr.vmem [resolvable:$true] %s37
      %43 = dma.hbm_to_vmem [thread:$0]  %s36, 24576, %s38, [#allocation6], 384, 384, 24
    $region9: #{tpu_custom_call.1} parent=1 // pred_fallthru
      _
    // Predicated region
    $region10: #{tpu_custom_call.1} parent=1 // pred_check
      _
    $region11: #{tpu_custom_call.1} parent=1 // pred_check_branch
      %45 = sbr.rel (0) target = $region13
    $region12: #{tpu_custom_call.1} parent=1 // pred_region
      %47 = vsyncadd [#allocation6], 0
      %s49 = sshll.u32 %s2, 4
      %s50 = int_to_ptr.hbm [resolvable:$true] %s49
      %s51 = sshll.u32 [#allocation7], 4
      %s52 = int_to_ptr.vmem [resolvable:$true] %s51
      %54 = dma.hbm_to_vmem [thread:$0]  %s50, 48, %s52, [#allocation6]
    $region13: #{tpu_custom_call.1} parent=1 // pred_fallthru
      _
    // Predicated region
    $region14: #{tpu_custom_call.1} parent=1 // pred_check
      _
    $region15: #{tpu_custom_call.1} parent=1 // pred_check_branch
      %56 = sbr.rel (0) target = $region17
    $region16: #{tpu_custom_call.1} parent=1 // pred_region
      %58 = vsyncadd [#allocation9], 0
      %s59 = sshll.u32 %s3, 4
      %s60 = int_to_ptr.hbm [resolvable:$true] %s59
      %s61 = sshll.u32 [#allocation8], 4
      %s62 = int_to_ptr.vmem [resolvable:$true] %s61
      %67 = dma.hbm_to_vmem [thread:$0]  %s60, 6144, %s62, [#allocation9], 128, 128, 8
    $region17: #{tpu_custom_call.1} parent=1 // pred_fallthru
      _
    // Predicated region
    $region18: #{tpu_custom_call.1} parent=1 // pred_check
      _
    $region19: #{tpu_custom_call.1} parent=1 // pred_check_branch
      %69 = sbr.rel (0) target = $region21
    $region20: #{tpu_custom_call.1} parent=1 // pred_region
      _
    $region21: #{tpu_custom_call.1} parent=1 // pred_fallthru
      _
    // Predicated region
    $region22: #{tpu_custom_call.1} parent=1 // pred_check
      _
    $region23: #{tpu_custom_call.1} parent=1 // pred_check_branch
      %71 = sbr.rel (0) target = $region25
    $region24: #{tpu_custom_call.1} parent=1 // pred_region
      %73 = vsyncadd [#allocation9], 0
      %s74 = sshll.u32 %s5, 4
      %s75 = int_to_ptr.hbm [resolvable:$true] %s74
      %s76 = sshll.u32 [#allocation10], 4
      %s77 = int_to_ptr.vmem [resolvable:$true] %s76
      %82 = dma.hbm_to_vmem [thread:$0]  %s75, 2560, %s77, [#allocation9], 512, 512, 32
    $region25: #{tpu_custom_call.1} parent=1 // pred_fallthru
      _
    // Predicated region
    $region26: #{tpu_custom_call.1} parent=1 // pred_check
      _
    $region27: #{tpu_custom_call.1} parent=1 // pred_check_branch
      %84 = sbr.rel (0) target = $region29
    $region28: #{tpu_custom_call.1} parent=1 // pred_region
      _
    $region29: #{tpu_custom_call.1} parent=1 // pred_fallthru
      _
    // Predicated region
    $region30: #{tpu_custom_call.1} parent=1 // pred_check
      _
    $region31: #{tpu_custom_call.1} parent=1 // pred_check_branch
      %86 = sbr.rel (0) target = $region33
    $region32: #{tpu_custom_call.1} parent=1 // pred_region
      _
    $region33: #{tpu_custom_call.1} parent=1 // pred_fallthru
      _
    // Predicated region
    $region34: #{tpu_custom_call.1} parent=1 // pred_check
      _
    $region35: #{tpu_custom_call.1} parent=1 // pred_check_branch
      %88 = sbr.rel (0) target = $region37
    $region36: #{tpu_custom_call.1} parent=1 // pred_region
      %90 = dma.done [#allocation3], 128
    $region37: #{tpu_custom_call.1} parent=1 // pred_fallthru
      _
    // Predicated region
    $region38: #{tpu_custom_call.1} parent=1 // pred_check
      _
    $region39: #{tpu_custom_call.1} parent=1 // pred_check_branch
      %92 = sbr.rel (0) target = $region41
    $region40: #{tpu_custom_call.1} parent=1 // pred_region
      %94 = dma.done [#allocation6], 24576
    $region41: #{tpu_custom_call.1} parent=1 // pred_fallthru
      _
    // Predicated region
    $region42: #{tpu_custom_call.1} parent=1 // pred_check
      _
    $region43: #{tpu_custom_call.1} parent=1 // pred_check_branch
      %96 = sbr.rel (0) target = $region45
    $region44: #{tpu_custom_call.1} parent=1 // pred_region
      %98 = dma.done [#allocation6], 48
    $region45: #{tpu_custom_call.1} parent=1 // pred_fallthru
      _
    // Predicated region
    $region46: #{tpu_custom_call.1} parent=1 // pred_check
      _
    $region47: #{tpu_custom_call.1} parent=1 // pred_check_branch
      %100 = sbr.rel (0) target = $region49
    $region48: #{tpu_custom_call.1} parent=1 // pred_region
      %102 = dma.done [#allocation9], 6144
    $region49: #{tpu_custom_call.1} parent=1 // pred_fallthru
      _
    // Predicated region
    $region50: #{tpu_custom_call.1} parent=1 // pred_check
      _
    $region51: #{tpu_custom_call.1} parent=1 // pred_check_branch
      %104 = sbr.rel (0) target = $region53
    $region52: #{tpu_custom_call.1} parent=1 // pred_region
      %106 = dma.done [#allocation9], 2560
    $region53: #{tpu_custom_call.1} parent=1 // pred_fallthru
      _
    %v107 = vld [vmem:[#allocation2] sm:$0xff]
    %v108 = vld [vmem:[#allocation5] sm:$0xff]
    %v109 = vld [vmem:[#allocation5 + $0x8] sm:$0xff]
    %v110 = vld [vmem:[#allocation5 + $0x10] sm:$0xff]
    %v111 = vld [vmem:[#allocation5 + $0x18] sm:$0xff]
    %v112 = vld [vmem:[#allocation5 + $0x20] sm:$0xff]
    %v113 = vld [vmem:[#allocation5 + $0x28] sm:$0xff]
    %v114 = vld [vmem:[#allocation5 + $0x30] sm:$0xff]
    %v115 = vld [vmem:[#allocation5 + $0x38] sm:$0xff]
    %v116 = vld [vmem:[#allocation5 + $0x40] sm:$0xff]
    %v117 = vld [vmem:[#allocation5 + $0x48] sm:$0xff]
    %v118 = vld [vmem:[#allocation5 + $0x50] sm:$0xff]
    %v119 = vld [vmem:[#allocation5 + $0x58] sm:$0xff]
    %v120 = vld [vmem:[#allocation5 + $0x60] sm:$0xff]
    %v121 = vld [vmem:[#allocation5 + $0x68] sm:$0xff]
    %v122 = vld [vmem:[#allocation5 + $0x70] sm:$0xff]
    %v123 = vld [vmem:[#allocation5 + $0x78] sm:$0xff]
    %v124 = vld [vmem:[#allocation5 + $0x80] sm:$0xff]
    %v125 = vld [vmem:[#allocation5 + $0x88] sm:$0xff]
    %v126 = vld [vmem:[#allocation5 + $0x90] sm:$0xff]
    %v127 = vld [vmem:[#allocation5 + $0x98] sm:$0xff]
    %v128 = vld [vmem:[#allocation5 + $0xa0] sm:$0xff]
    %v129 = vld [vmem:[#allocation5 + $0xa8] sm:$0xff]
    %v130 = vld [vmem:[#allocation5 + $0xb0] sm:$0xff]
    %v131 = vld [vmem:[#allocation5 + $0xb8] sm:$0xff]
    %v132 = vld [vmem:[#allocation5 + $0xc0] sm:$0xff]
    %v133 = vld [vmem:[#allocation5 + $0xc8] sm:$0xff]
    %v134 = vld [vmem:[#allocation5 + $0xd0] sm:$0xff]
    %v135 = vld [vmem:[#allocation5 + $0xd8] sm:$0xff]
    %v136 = vld [vmem:[#allocation5 + $0xe0] sm:$0xff]
    %v137 = vld [vmem:[#allocation5 + $0xe8] sm:$0xff]
    %v138 = vld [vmem:[#allocation5 + $0xf0] sm:$0xff]
    %v139 = vld [vmem:[#allocation5 + $0xf8] sm:$0xff]
    %v140 = vld [vmem:[#allocation5 + $0x100] sm:$0xff]
    %v141 = vld [vmem:[#allocation5 + $0x108] sm:$0xff]
    %v142 = vld [vmem:[#allocation5 + $0x110] sm:$0xff]
    %v143 = vld [vmem:[#allocation5 + $0x118] sm:$0xff]
    %v144 = vld [vmem:[#allocation5 + $0x120] sm:$0xff]
    %v145 = vld [vmem:[#allocation5 + $0x128] sm:$0xff]
    %v146 = vld [vmem:[#allocation5 + $0x130] sm:$0xff]
    %v147 = vld [vmem:[#allocation5 + $0x138] sm:$0xff]
    %v148 = vld [vmem:[#allocation5 + $0x140] sm:$0xff]
    %v149 = vld [vmem:[#allocation5 + $0x148] sm:$0xff]
    %v150 = vld [vmem:[#allocation5 + $0x150] sm:$0xff]
    %v151 = vld [vmem:[#allocation5 + $0x158] sm:$0xff]
    %v152 = vld [vmem:[#allocation5 + $0x160] sm:$0xff]
    %v153 = vld [vmem:[#allocation5 + $0x168] sm:$0xff]
    %v154 = vld [vmem:[#allocation5 + $0x170] sm:$0xff]
    %v155 = vld [vmem:[#allocation5 + $0x178] sm:$0xff]
    %v156 = vld [vmem:[#allocation5 + $0x180] sm:$0xff]
    %v157 = vld [vmem:[#allocation5 + $0x188] sm:$0xff]
    %v158 = vld [vmem:[#allocation5 + $0x190] sm:$0xff]
    %v159 = vld [vmem:[#allocation5 + $0x198] sm:$0xff]
    %v160 = vld [vmem:[#allocation5 + $0x1a0] sm:$0xff]
    %v161 = vld [vmem:[#allocation5 + $0x1a8] sm:$0xff]
    %v162 = vld [vmem:[#allocation5 + $0x1b0] sm:$0xff]
    %v163 = vld [vmem:[#allocation5 + $0x1b8] sm:$0xff]
    %v164 = vld [vmem:[#allocation5 + $0x1c0] sm:$0xff]
    %v165 = vld [vmem:[#allocation5 + $0x1c8] sm:$0xff]
    %v166 = vld [vmem:[#allocation5 + $0x1d0] sm:$0xff]
    %v167 = vld [vmem:[#allocation5 + $0x1d8] sm:$0xff]
    %v168 = vld [vmem:[#allocation5 + $0x1e0] sm:$0xff]
    %v169 = vld [vmem:[#allocation5 + $0x1e8] sm:$0xff]
    %v170 = vld [vmem:[#allocation5 + $0x1f0] sm:$0xff]
    %v171 = vld [vmem:[#allocation5 + $0x1f8] sm:$0xff]
    %v172 = vld [vmem:[#allocation5 + $0x200] sm:$0xff]
    %v173 = vld [vmem:[#allocation5 + $0x208] sm:$0xff]
    %v174 = vld [vmem:[#allocation5 + $0x210] sm:$0xff]
    %v175 = vld [vmem:[#allocation5 + $0x218] sm:$0xff]
    %v176 = vld [vmem:[#allocation5 + $0x220] sm:$0xff]
    %v177 = vld [vmem:[#allocation5 + $0x228] sm:$0xff]
    %v178 = vld [vmem:[#allocation5 + $0x230] sm:$0xff]
    %v179 = vld [vmem:[#allocation5 + $0x238] sm:$0xff]
    %v180 = vld [vmem:[#allocation5 + $0x240] sm:$0xff]
    %v181 = vld [vmem:[#allocation5 + $0x248] sm:$0xff]
    %v182 = vld [vmem:[#allocation5 + $0x250] sm:$0xff]
    %v183 = vld [vmem:[#allocation5 + $0x258] sm:$0xff]
    %v184 = vld [vmem:[#allocation5 + $0x260] sm:$0xff]
    %v185 = vld [vmem:[#allocation5 + $0x268] sm:$0xff]
    %v186 = vld [vmem:[#allocation5 + $0x270] sm:$0xff]
    %v187 = vld [vmem:[#allocation5 + $0x278] sm:$0xff]
    %v188 = vld [vmem:[#allocation5 + $0x280] sm:$0xff]
    %v189 = vld [vmem:[#allocation5 + $0x288] sm:$0xff]
    %v190 = vld [vmem:[#allocation5 + $0x290] sm:$0xff]
    %v191 = vld [vmem:[#allocation5 + $0x298] sm:$0xff]
    %v192 = vld [vmem:[#allocation5 + $0x2a0] sm:$0xff]
    %v193 = vld [vmem:[#allocation5 + $0x2a8] sm:$0xff]
    %v194 = vld [vmem:[#allocation5 + $0x2b0] sm:$0xff]
    %v195 = vld [vmem:[#allocation5 + $0x2b8] sm:$0xff]
    %v196 = vld [vmem:[#allocation5 + $0x2c0] sm:$0xff]
    %v197 = vld [vmem:[#allocation5 + $0x2c8] sm:$0xff]
    %v198 = vld [vmem:[#allocation5 + $0x2d0] sm:$0xff]
    %v199 = vld [vmem:[#allocation5 + $0x2d8] sm:$0xff]
    %v200 = vld [vmem:[#allocation5 + $0x2e0] sm:$0xff]
    %v201 = vld [vmem:[#allocation5 + $0x2e8] sm:$0xff]
    %v202 = vld [vmem:[#allocation5 + $0x2f0] sm:$0xff]
    %v203 = vld [vmem:[#allocation5 + $0x2f8] sm:$0xff]
    %v204 = vld [vmem:[#allocation5 + $0x300] sm:$0xff]
    %v205 = vld [vmem:[#allocation5 + $0x308] sm:$0xff]
    %v206 = vld [vmem:[#allocation5 + $0x310] sm:$0xff]
    %v207 = vld [vmem:[#allocation5 + $0x318] sm:$0xff]
    %v208 = vld [vmem:[#allocation5 + $0x320] sm:$0xff]
    %v209 = vld [vmem:[#allocation5 + $0x328] sm:$0xff]
    %v210 = vld [vmem:[#allocation5 + $0x330] sm:$0xff]
    %v211 = vld [vmem:[#allocation5 + $0x338] sm:$0xff]
    %v212 = vld [vmem:[#allocation5 + $0x340] sm:$0xff]
    %v213 = vld [vmem:[#allocation5 + $0x348] sm:$0xff]
    %v214 = vld [vmem:[#allocation5 + $0x350] sm:$0xff]
    %v215 = vld [vmem:[#allocation5 + $0x358] sm:$0xff]
    %v216 = vld [vmem:[#allocation5 + $0x360] sm:$0xff]
    %v217 = vld [vmem:[#allocation5 + $0x368] sm:$0xff]
    %v218 = vld [vmem:[#allocation5 + $0x370] sm:$0xff]
    %v219 = vld [vmem:[#allocation5 + $0x378] sm:$0xff]
    %v220 = vld [vmem:[#allocation5 + $0x380] sm:$0xff]
    %v221 = vld [vmem:[#allocation5 + $0x388] sm:$0xff]
    %v222 = vld [vmem:[#allocation5 + $0x390] sm:$0xff]
    %v223 = vld [vmem:[#allocation5 + $0x398] sm:$0xff]
    %v224 = vld [vmem:[#allocation5 + $0x3a0] sm:$0xff]
    %v225 = vld [vmem:[#allocation5 + $0x3a8] sm:$0xff]
    %v226 = vld [vmem:[#allocation5 + $0x3b0] sm:$0xff]
    %v227 = vld [vmem:[#allocation5 + $0x3b8] sm:$0xff]
    %v228 = vld [vmem:[#allocation5 + $0x3c0] sm:$0xff]
    %v229 = vld [vmem:[#allocation5 + $0x3c8] sm:$0xff]
    %v230 = vld [vmem:[#allocation5 + $0x3d0] sm:$0xff]
    %v231 = vld [vmem:[#allocation5 + $0x3d8] sm:$0xff]
    %v232 = vld [vmem:[#allocation5 + $0x3e0] sm:$0xff]
    %v233 = vld [vmem:[#allocation5 + $0x3e8] sm:$0xff]
    %v234 = vld [vmem:[#allocation5 + $0x3f0] sm:$0xff]
    %v235 = vld [vmem:[#allocation5 + $0x3f8] sm:$0xff]
    %v236 = vld [vmem:[#allocation5 + $0x400] sm:$0xff]
    %v237 = vld [vmem:[#allocation5 + $0x408] sm:$0xff]
    %v238 = vld [vmem:[#allocation5 + $0x410] sm:$0xff]
    %v239 = vld [vmem:[#allocation5 + $0x418] sm:$0xff]
    %v240 = vld [vmem:[#allocation5 + $0x420] sm:$0xff]
    %v241 = vld [vmem:[#allocation5 + $0x428] sm:$0xff]
    %v242 = vld [vmem:[#allocation5 + $0x430] sm:$0xff]
    %v243 = vld [vmem:[#allocation5 + $0x438] sm:$0xff]
    %v244 = vld [vmem:[#allocation5 + $0x440] sm:$0xff]
    %v245 = vld [vmem:[#allocation5 + $0x448] sm:$0xff]
    %v246 = vld [vmem:[#allocation5 + $0x450] sm:$0xff]
    %v247 = vld [vmem:[#allocation5 + $0x458] sm:$0xff]
    %v248 = vld [vmem:[#allocation5 + $0x460] sm:$0xff]
    %v249 = vld [vmem:[#allocation5 + $0x468] sm:$0xff]
    %v250 = vld [vmem:[#allocation5 + $0x470] sm:$0xff]
    %v251 = vld [vmem:[#allocation5 + $0x478] sm:$0xff]
    %v252 = vld [vmem:[#allocation5 + $0x480] sm:$0xff]
    %v253 = vld [vmem:[#allocation5 + $0x488] sm:$0xff]
    %v254 = vld [vmem:[#allocation5 + $0x490] sm:$0xff]
    %v255 = vld [vmem:[#allocation5 + $0x498] sm:$0xff]
    %v256 = vld [vmem:[#allocation5 + $0x4a0] sm:$0xff]
    %v257 = vld [vmem:[#allocation5 + $0x4a8] sm:$0xff]
    %v258 = vld [vmem:[#allocation5 + $0x4b0] sm:$0xff]
    %v259 = vld [vmem:[#allocation5 + $0x4b8] sm:$0xff]
    %v260 = vld [vmem:[#allocation5 + $0x4c0] sm:$0xff]
    %v261 = vld [vmem:[#allocation5 + $0x4c8] sm:$0xff]
    %v262 = vld [vmem:[#allocation5 + $0x4d0] sm:$0xff]
    %v263 = vld [vmem:[#allocation5 + $0x4d8] sm:$0xff]
    %v264 = vld [vmem:[#allocation5 + $0x4e0] sm:$0xff]
    %v265 = vld [vmem:[#allocation5 + $0x4e8] sm:$0xff]
    %v266 = vld [vmem:[#allocation5 + $0x4f0] sm:$0xff]
    %v267 = vld [vmem:[#allocation5 + $0x4f8] sm:$0xff]
    %v268 = vld [vmem:[#allocation5 + $0x500] sm:$0xff]
    %v269 = vld [vmem:[#allocation5 + $0x508] sm:$0xff]
    %v270 = vld [vmem:[#allocation5 + $0x510] sm:$0xff]
    %v271 = vld [vmem:[#allocation5 + $0x518] sm:$0xff]
    %v272 = vld [vmem:[#allocation5 + $0x520] sm:$0xff]
    %v273 = vld [vmem:[#allocation5 + $0x528] sm:$0xff]
    %v274 = vld [vmem:[#allocation5 + $0x530] sm:$0xff]
    %v275 = vld [vmem:[#allocation5 + $0x538] sm:$0xff]
    %v276 = vld [vmem:[#allocation5 + $0x540] sm:$0xff]
    %v277 = vld [vmem:[#allocation5 + $0x548] sm:$0xff]
    %v278 = vld [vmem:[#allocation5 + $0x550] sm:$0xff]
    %v279 = vld [vmem:[#allocation5 + $0x558] sm:$0xff]
    %v280 = vld [vmem:[#allocation5 + $0x560] sm:$0xff]
    %v281 = vld [vmem:[#allocation5 + $0x568] sm:$0xff]
    %v282 = vld [vmem:[#allocation5 + $0x570] sm:$0xff]
    %v283 = vld [vmem:[#allocation5 + $0x578] sm:$0xff]
    %v284 = vld [vmem:[#allocation5 + $0x580] sm:$0xff]
    %v285 = vld [vmem:[#allocation5 + $0x588] sm:$0xff]
    %v286 = vld [vmem:[#allocation5 + $0x590] sm:$0xff]
    %v287 = vld [vmem:[#allocation5 + $0x598] sm:$0xff]
    %v288 = vld [vmem:[#allocation5 + $0x5a0] sm:$0xff]
    %v289 = vld [vmem:[#allocation5 + $0x5a8] sm:$0xff]
    %v290 = vld [vmem:[#allocation5 + $0x5b0] sm:$0xff]
    %v291 = vld [vmem:[#allocation5 + $0x5b8] sm:$0xff]
    %v292 = vld [vmem:[#allocation5 + $0x5c0] sm:$0xff]
    %v293 = vld [vmem:[#allocation5 + $0x5c8] sm:$0xff]
    %v294 = vld [vmem:[#allocation5 + $0x5d0] sm:$0xff]
    %v295 = vld [vmem:[#allocation5 + $0x5d8] sm:$0xff]
    %v296 = vld [vmem:[#allocation5 + $0x5e0] sm:$0xff]
    %v297 = vld [vmem:[#allocation5 + $0x5e8] sm:$0xff]
    %v298 = vld [vmem:[#allocation5 + $0x5f0] sm:$0xff]
    %v299 = vld [vmem:[#allocation5 + $0x5f8] sm:$0xff]
    %v300 = vld [vmem:[#allocation7] sm:$0x7]
    %v302 = vperm.slane %v300, 0
    %v303 = vperm.slane %v300, 1
    %v304 = vperm.slane %v300, 2
    %309 = vst [vmem:[#allocation1] ss:$4 sm:$0xff] %v107
    %v310 = vld.sshfl [vmem:[#allocation1] sm:$0xff pattern:$0x73625140]
    %v311 = vld.sshfl [vmem:[#allocation1 + $0x8] sm:$0xff pattern:$0x73625140]
    %v312 = vld.sshfl [vmem:[#allocation1 + $0x10] sm:$0xff pattern:$0x73625140]
    %v313 = vld.sshfl [vmem:[#allocation1 + $0x18] sm:$0xff pattern:$0x73625140]
    %318 = vmatpush.msra.mxu0 %v153
    %319 = vmatpush.msra.mxu0 %v150
    %320 = vmatpush.msra.mxu0 %v147
    %321 = vmatpush.msra.mxu0 %v144
    %322 = vmatpush.msra.mxu0 %v141
    %323 = vmatpush.msra.mxu0 %v138
    %324 = vmatpush.msra.mxu0 %v135
    %325 = vmatpush.msra.mxu0 %v132
    %326 = vmatpush.msra.mxu0 %v129
    %327 = vmatpush.msra.mxu0 %v126
    %328 = vmatpush.msra.mxu0 %v123
    %329 = vmatpush.msra.mxu0 %v120
    %330 = vmatpush.msra.mxu0 %v117
    %331 = vmatpush.msra.mxu0 %v114
    %332 = vmatpush.msra.mxu0 %v111
    %333 = vmatpush.msra.mxu0 %v108
    %334 = vmatmul.f32.gmra.mxu0 %v310
    %v335 = vpop.f32.mrf.mxu0
    %v336 = vadd.f32 %v302, %v335
    %337 = vdwg.mxu0
    %338 = vmatpush.msra.mxu0 %v201
    %339 = vmatpush.msra.mxu0 %v198
    %340 = vmatpush.msra.mxu0 %v195
    %341 = vmatpush.msra.mxu0 %v192
    %342 = vmatpush.msra.mxu0 %v189
    %343 = vmatpush.msra.mxu0 %v186
    %344 = vmatpush.msra.mxu0 %v183
    %345 = vmatpush.msra.mxu0 %v180
    %346 = vmatpush.msra.mxu0 %v177
    %347 = vmatpush.msra.mxu0 %v174
    %348 = vmatpush.msra.mxu0 %v171
    %349 = vmatpush.msra.mxu0 %v168
    %350 = vmatpush.msra.mxu0 %v165
    %351 = vmatpush.msra.mxu0 %v162
    %352 = vmatpush.msra.mxu0 %v159
    %353 = vmatpush.msra.mxu0 %v156
    %354 = vmatmul.f32.gmra.mxu0 %v311
    %v355 = vpop.f32.mrf.mxu0
    %v356 = vadd.f32 %v336, %v355
    %357 = vdwg.mxu0
    %358 = vmatpush.msra.mxu0 %v249
    %359 = vmatpush.msra.mxu0 %v246
    %360 = vmatpush.msra.mxu0 %v243
    %361 = vmatpush.msra.mxu0 %v240
    %362 = vmatpush.msra.mxu0 %v237
    %363 = vmatpush.msra.mxu0 %v234
    %364 = vmatpush.msra.mxu0 %v231
    %365 = vmatpush.msra.mxu0 %v228
    %366 = vmatpush.msra.mxu0 %v225
    %367 = vmatpush.msra.mxu0 %v222
    %368 = vmatpush.msra.mxu0 %v219
    %369 = vmatpush.msra.mxu0 %v216
    %370 = vmatpush.msra.mxu0 %v213
    %371 = vmatpush.msra.mxu0 %v210
    %372 = vmatpush.msra.mxu0 %v207
    %373 = vmatpush.msra.mxu0 %v204
    %374 = vmatmul.f32.gmra.mxu0 %v312
    %v375 = vpop.f32.mrf.mxu0
    %v376 = vadd.f32 %v356, %v375
    %377 = vdwg.mxu0
    %378 = vmatpush.msra.mxu0 %v297
    %379 = vmatpush.msra.mxu0 %v294
    %380 = vmatpush.msra.mxu0 %v291
    %381 = vmatpush.msra.mxu0 %v288
    %382 = vmatpush.msra.mxu0 %v285
    %383 = vmatpush.msra.mxu0 %v282
    %384 = vmatpush.msra.mxu0 %v279
    %385 = vmatpush.msra.mxu0 %v276
    %386 = vmatpush.msra.mxu0 %v273
    %387 = vmatpush.msra.mxu0 %v270
    %388 = vmatpush.msra.mxu0 %v267
    %389 = vmatpush.msra.mxu0 %v264
    %390 = vmatpush.msra.mxu0 %v261
    %391 = vmatpush.msra.mxu0 %v258
    %392 = vmatpush.msra.mxu0 %v255
    %393 = vmatpush.msra.mxu0 %v252
    %394 = vmatmul.f32.gmra.mxu0 %v313
    %v395 = vpop.f32.mrf.mxu0
    %v396 = vadd.f32 %v376, %v395
    %397 = vdwg.mxu0
    %398 = vmatpush.msra.mxu0 %v154
    %399 = vmatpush.msra.mxu0 %v151
    %400 = vmatpush.msra.mxu0 %v148
    %401 = vmatpush.msra.mxu0 %v145
    %402 = vmatpush.msra.mxu0 %v142
    %403 = vmatpush.msra.mxu0 %v139
    %404 = vmatpush.msra.mxu0 %v136
    %405 = vmatpush.msra.mxu0 %v133
    %406 = vmatpush.msra.mxu0 %v130
    %407 = vmatpush.msra.mxu0 %v127
    %408 = vmatpush.msra.mxu0 %v124
    %409 = vmatpush.msra.mxu0 %v121
    %410 = vmatpush.msra.mxu0 %v118
    %411 = vmatpush.msra.mxu0 %v115
    %412 = vmatpush.msra.mxu0 %v112
    %413 = vmatpush.msra.mxu0 %v109
    %414 = vmatmul.f32.gmra.mxu0 %v310
    %v415 = vpop.f32.mrf.mxu0
    %v416 = vadd.f32 %v303, %v415
    %417 = vdwg.mxu0
    %418 = vmatpush.msra.mxu0 %v202
    %419 = vmatpush.msra.mxu0 %v199
    %420 = vmatpush.msra.mxu0 %v196
    %421 = vmatpush.msra.mxu0 %v193
    %422 = vmatpush.msra.mxu0 %v190
    %423 = vmatpush.msra.mxu0 %v187
    %424 = vmatpush.msra.mxu0 %v184
    %425 = vmatpush.msra.mxu0 %v181
    %426 = vmatpush.msra.mxu0 %v178
    %427 = vmatpush.msra.mxu0 %v175
    %428 = vmatpush.msra.mxu0 %v172
    %429 = vmatpush.msra.mxu0 %v169
    %430 = vmatpush.msra.mxu0 %v166
    %431 = vmatpush.msra.mxu0 %v163
    %432 = vmatpush.msra.mxu0 %v160
    %433 = vmatpush.msra.mxu0 %v157
    %434 = vmatmul.f32.gmra.mxu0 %v311
    %v435 = vpop.f32.mrf.mxu0
    %v436 = vadd.f32 %v416, %v435
    %437 = vdwg.mxu0
    %438 = vmatpush.msra.mxu0 %v250
    %439 = vmatpush.msra.mxu0 %v247
    %440 = vmatpush.msra.mxu0 %v244
    %441 = vmatpush.msra.mxu0 %v241
    %442 = vmatpush.msra.mxu0 %v238
    %443 = vmatpush.msra.mxu0 %v235
    %444 = vmatpush.msra.mxu0 %v232
    %445 = vmatpush.msra.mxu0 %v229
    %446 = vmatpush.msra.mxu0 %v226
    %447 = vmatpush.msra.mxu0 %v223
    %448 = vmatpush.msra.mxu0 %v220
    %449 = vmatpush.msra.mxu0 %v217
    %450 = vmatpush.msra.mxu0 %v214
    %451 = vmatpush.msra.mxu0 %v211
    %452 = vmatpush.msra.mxu0 %v208
    %453 = vmatpush.msra.mxu0 %v205
    %454 = vmatmul.f32.gmra.mxu0 %v312
    %v455 = vpop.f32.mrf.mxu0
    %v456 = vadd.f32 %v436, %v455
    %457 = vdwg.mxu0
    %458 = vmatpush.msra.mxu0 %v298
    %459 = vmatpush.msra.mxu0 %v295
    %460 = vmatpush.msra.mxu0 %v292
    %461 = vmatpush.msra.mxu0 %v289
    %462 = vmatpush.msra.mxu0 %v286
    %463 = vmatpush.msra.mxu0 %v283
    %464 = vmatpush.msra.mxu0 %v280
    %465 = vmatpush.msra.mxu0 %v277
    %466 = vmatpush.msra.mxu0 %v274
    %467 = vmatpush.msra.mxu0 %v271
    %468 = vmatpush.msra.mxu0 %v268
    %469 = vmatpush.msra.mxu0 %v265
    %470 = vmatpush.msra.mxu0 %v262
    %471 = vmatpush.msra.mxu0 %v259
    %472 = vmatpush.msra.mxu0 %v256
    %473 = vmatpush.msra.mxu0 %v253
    %474 = vmatmul.f32.gmra.mxu0 %v313
    %v475 = vpop.f32.mrf.mxu0
    %v476 = vadd.f32 %v456, %v475
    %477 = vdwg.mxu0
    %478 = vmatpush.msra.mxu0 %v155
    %479 = vmatpush.msra.mxu0 %v152
    %480 = vmatpush.msra.mxu0 %v149
    %481 = vmatpush.msra.mxu0 %v146
    %482 = vmatpush.msra.mxu0 %v143
    %483 = vmatpush.msra.mxu0 %v140
    %484 = vmatpush.msra.mxu0 %v137
    %485 = vmatpush.msra.mxu0 %v134
    %486 = vmatpush.msra.mxu0 %v131
    %487 = vmatpush.msra.mxu0 %v128
    %488 = vmatpush.msra.mxu0 %v125
    %489 = vmatpush.msra.mxu0 %v122
    %490 = vmatpush.msra.mxu0 %v119
    %491 = vmatpush.msra.mxu0 %v116
    %492 = vmatpush.msra.mxu0 %v113
    %493 = vmatpush.msra.mxu0 %v110
    %494 = vmatmul.f32.gmra.mxu0 %v310
    %v495 = vpop.f32.mrf.mxu0
    %v496 = vadd.f32 %v304, %v495
    %497 = vdwg.mxu0
    %498 = vmatpush.msra.mxu0 %v203
    %499 = vmatpush.msra.mxu0 %v200
    %500 = vmatpush.msra.mxu0 %v197
    %501 = vmatpush.msra.mxu0 %v194
    %502 = vmatpush.msra.mxu0 %v191
    %503 = vmatpush.msra.mxu0 %v188
    %504 = vmatpush.msra.mxu0 %v185
    %505 = vmatpush.msra.mxu0 %v182
    %506 = vmatpush.msra.mxu0 %v179
    %507 = vmatpush.msra.mxu0 %v176
    %508 = vmatpush.msra.mxu0 %v173
    %509 = vmatpush.msra.mxu0 %v170
    %510 = vmatpush.msra.mxu0 %v167
    %511 = vmatpush.msra.mxu0 %v164
    %512 = vmatpush.msra.mxu0 %v161
    %513 = vmatpush.msra.mxu0 %v158
    %514 = vmatmul.f32.gmra.mxu0 %v311
    %v515 = vpop.f32.mrf.mxu0
    %v516 = vadd.f32 %v496, %v515
    %517 = vdwg.mxu0
    %518 = vmatpush.msra.mxu0 %v251
    %519 = vmatpush.msra.mxu0 %v248
    %520 = vmatpush.msra.mxu0 %v245
    %521 = vmatpush.msra.mxu0 %v242
    %522 = vmatpush.msra.mxu0 %v239
    %523 = vmatpush.msra.mxu0 %v236
    %524 = vmatpush.msra.mxu0 %v233
    %525 = vmatpush.msra.mxu0 %v230
    %526 = vmatpush.msra.mxu0 %v227
    %527 = vmatpush.msra.mxu0 %v224
    %528 = vmatpush.msra.mxu0 %v221
    %529 = vmatpush.msra.mxu0 %v218
    %530 = vmatpush.msra.mxu0 %v215
    %531 = vmatpush.msra.mxu0 %v212
    %532 = vmatpush.msra.mxu0 %v209
    %533 = vmatpush.msra.mxu0 %v206
    %534 = vmatmul.f32.gmra.mxu0 %v312
    %v535 = vpop.f32.mrf.mxu0
    %v536 = vadd.f32 %v516, %v535
    %537 = vdwg.mxu0
    %538 = vmatpush.msra.mxu0 %v299
    %539 = vmatpush.msra.mxu0 %v296
    %540 = vmatpush.msra.mxu0 %v293
    %541 = vmatpush.msra.mxu0 %v290
    %542 = vmatpush.msra.mxu0 %v287
    %543 = vmatpush.msra.mxu0 %v284
    %544 = vmatpush.msra.mxu0 %v281
    %545 = vmatpush.msra.mxu0 %v278
    %546 = vmatpush.msra.mxu0 %v275
    %547 = vmatpush.msra.mxu0 %v272
    %548 = vmatpush.msra.mxu0 %v269
    %549 = vmatpush.msra.mxu0 %v266
    %550 = vmatpush.msra.mxu0 %v263
    %551 = vmatpush.msra.mxu0 %v260
    %552 = vmatpush.msra.mxu0 %v257
    %553 = vmatpush.msra.mxu0 %v254
    %554 = vmatmul.f32.gmra.mxu0 %v313
    %v555 = vpop.f32.mrf.mxu0
    %v556 = vadd.f32 %v536, %v555
    %557 = vdwg.mxu0
    %v558 = vxor.u32 %v396, 2147483648
    %v559 = vxor.u32 %v476, 2147483648
    %v560 = vxor.u32 %v556, 2147483648
    %v561 = vmul.f32 %v558, 1.442695
    %v562 = vpow.pop %v561
    %v563 = vmul.f32 %v559, 1.442695
    %v564 = vpow.pop %v563
    %v565 = vmul.f32 %v560, 1.442695
    %v566 = vpow.pop %v565
    %v567 = vadd.f32 %v562, 1.0
    %v568 = vadd.f32 %v564, 1.0
    %v569 = vadd.f32 %v566, 1.0
    %v570 = vrcp.pop %v567
    %v571 = vmul.f32 %v567, %v570
    %v572 = vsub.f32 1.0, %v571
    %v573 = vmul.f32 %v570, %v572
    %v574 = vadd.f32 %v570, %v573
    %vm575 = vweird.f32 %v567
    %vm576 = vweird.f32 %v570
    %vm577 = vmor %vm575, %vm576
    %v578 = vsel %vm577, %v570, %v574
    %v579 = vand.u32 2147483647, %v567
    %vm580 = vcmp.eq.f32.partialorder %v579, 8.507059e+37
    %v581 = vand.u32 %v567, 2147483648
    %v582 = vor.u32 1.1754944e-38, %v581
    %v583 = vsel %vm580, %v582, %v578
    %v584 = vmul.f32 1.0, %v583
    %v585 = vrcp.pop %v568
    %v586 = vmul.f32 %v568, %v585
    %v587 = vsub.f32 1.0, %v586
    %v588 = vmul.f32 %v585, %v587
    %v589 = vadd.f32 %v585, %v588
    %vm590 = vweird.f32 %v568
    %vm591 = vweird.f32 %v585
    %vm592 = vmor %vm590, %vm591
    %v593 = vsel %vm592, %v585, %v589
    %v594 = vand.u32 2147483647, %v568
    %vm595 = vcmp.eq.f32.partialorder %v594, 8.507059e+37
    %v596 = vand.u32 %v568, 2147483648
    %v597 = vor.u32 1.1754944e-38, %v596
    %v598 = vsel %vm595, %v597, %v593
    %v599 = vmul.f32 1.0, %v598
    %v600 = vrcp.pop %v569
    %v601 = vmul.f32 %v569, %v600
    %v602 = vsub.f32 1.0, %v601
    %v603 = vmul.f32 %v600, %v602
    %v604 = vadd.f32 %v600, %v603
    %vm605 = vweird.f32 %v569
    %vm606 = vweird.f32 %v600
    %vm607 = vmor %vm605, %vm606
    %v608 = vsel %vm607, %v600, %v604
    %v609 = vand.u32 2147483647, %v569
    %vm610 = vcmp.eq.f32.partialorder %v609, 8.507059e+37
    %v611 = vand.u32 %v569, 2147483648
    %v612 = vor.u32 1.1754944e-38, %v611
    %v613 = vsel %vm610, %v612, %v608
    %v614 = vmul.f32 1.0, %v613
    %v615 = vmul.f32 %v396, %v584
    %v616 = vmul.f32 %v476, %v599
    %v617 = vmul.f32 %v556, %v614
    %v618 = vld [vmem:[#allocation8] sm:$0xff]
    %v619 = vld [vmem:[#allocation8 + $0x8] sm:$0xff]
    %v620 = vld [vmem:[#allocation8 + $0x10] sm:$0xff]
    %v621 = vld [vmem:[#allocation8 + $0x18] sm:$0xff]
    %v622 = vld [vmem:[#allocation8 + $0x20] sm:$0xff]
    %v623 = vld [vmem:[#allocation8 + $0x28] sm:$0xff]
    %v624 = vld [vmem:[#allocation8 + $0x30] sm:$0xff]
    %v625 = vld [vmem:[#allocation8 + $0x38] sm:$0xff]
    %v626 = vld [vmem:[#allocation8 + $0x40] sm:$0xff]
    %v627 = vld [vmem:[#allocation8 + $0x48] sm:$0xff]
    %v628 = vld [vmem:[#allocation8 + $0x50] sm:$0xff]
    %v629 = vld [vmem:[#allocation8 + $0x58] sm:$0xff]
    %v630 = vld [vmem:[#allocation8 + $0x60] sm:$0xff]
    %v631 = vld [vmem:[#allocation8 + $0x68] sm:$0xff]
    %v632 = vld [vmem:[#allocation8 + $0x70] sm:$0xff]
    %v633 = vld [vmem:[#allocation8 + $0x78] sm:$0xff]
    %v634 = vld [vmem:[#allocation8 + $0x80] sm:$0xff]
    %v635 = vld [vmem:[#allocation8 + $0x88] sm:$0xff]
    %v636 = vld [vmem:[#allocation8 + $0x90] sm:$0xff]
    %v637 = vld [vmem:[#allocation8 + $0x98] sm:$0xff]
    %v638 = vld [vmem:[#allocation8 + $0xa0] sm:$0xff]
    %v639 = vld [vmem:[#allocation8 + $0xa8] sm:$0xff]
    %v640 = vld [vmem:[#allocation8 + $0xb0] sm:$0xff]
    %v641 = vld [vmem:[#allocation8 + $0xb8] sm:$0xff]
    %v642 = vld [vmem:[#allocation8 + $0xc0] sm:$0xff]
    %v643 = vld [vmem:[#allocation8 + $0xc8] sm:$0xff]
    %v644 = vld [vmem:[#allocation8 + $0xd0] sm:$0xff]
    %v645 = vld [vmem:[#allocation8 + $0xd8] sm:$0xff]
    %v646 = vld [vmem:[#allocation8 + $0xe0] sm:$0xff]
    %v647 = vld [vmem:[#allocation8 + $0xe8] sm:$0xff]
    %v648 = vld [vmem:[#allocation8 + $0xf0] sm:$0xff]
    %v649 = vld [vmem:[#allocation8 + $0xf8] sm:$0xff]
    %v650 = vld [vmem:[#allocation8 + $0x100] sm:$0xff]
    %v651 = vld [vmem:[#allocation8 + $0x108] sm:$0xff]
    %v652 = vld [vmem:[#allocation8 + $0x110] sm:$0xff]
    %v653 = vld [vmem:[#allocation8 + $0x118] sm:$0xff]
    %v654 = vld [vmem:[#allocation8 + $0x120] sm:$0xff]
    %v655 = vld [vmem:[#allocation8 + $0x128] sm:$0xff]
    %v656 = vld [vmem:[#allocation8 + $0x130] sm:$0xff]
    %v657 = vld [vmem:[#allocation8 + $0x138] sm:$0xff]
    %v658 = vld [vmem:[#allocation8 + $0x140] sm:$0xff]
    %v659 = vld [vmem:[#allocation8 + $0x148] sm:$0xff]
    %v660 = vld [vmem:[#allocation8 + $0x150] sm:$0xff]
    %v661 = vld [vmem:[#allocation8 + $0x158] sm:$0xff]
    %v662 = vld [vmem:[#allocation8 + $0x160] sm:$0xff]
    %v663 = vld [vmem:[#allocation8 + $0x168] sm:$0xff]
    %v664 = vld [vmem:[#allocation8 + $0x170] sm:$0xff]
    %v665 = vld [vmem:[#allocation8 + $0x178] sm:$0xff]
    %v666 = vld [vmem:[%s4] sm:$0x1]
    %v668 = vperm.slane %v666, 0
    %670 = vmatpush.msra.mxu0 %v633
    %671 = vmatpush.msra.mxu0 %v632
    %672 = vmatpush.msra.mxu0 %v631
    %673 = vmatpush.msra.mxu0 %v630
    %674 = vmatpush.msra.mxu0 %v629
    %675 = vmatpush.msra.mxu0 %v628
    %676 = vmatpush.msra.mxu0 %v627
    %677 = vmatpush.msra.mxu0 %v626
    %678 = vmatpush.msra.mxu0 %v625
    %679 = vmatpush.msra.mxu0 %v624
    %680 = vmatpush.msra.mxu0 %v623
    %681 = vmatpush.msra.mxu0 %v622
    %682 = vmatpush.msra.mxu0 %v621
    %683 = vmatpush.msra.mxu0 %v620
    %684 = vmatpush.msra.mxu0 %v619
    %685 = vmatpush.msra.mxu0 %v618
    %686 = vmatmul.f32.gmra.mxu0 %v615
    %v687 = vpop.f32.mrf.mxu0
    %v688 = vadd.f32 %v668, %v687
    %689 = vdwg.mxu0
    %690 = vmatpush.msra.mxu0 %v649
    %691 = vmatpush.msra.mxu0 %v648
    %692 = vmatpush.msra.mxu0 %v647
    %693 = vmatpush.msra.mxu0 %v646
    %694 = vmatpush.msra.mxu0 %v645
    %695 = vmatpush.msra.mxu0 %v644
    %696 = vmatpush.msra.mxu0 %v643
    %697 = vmatpush.msra.mxu0 %v642
    %698 = vmatpush.msra.mxu0 %v641
    %699 = vmatpush.msra.mxu0 %v640
    %700 = vmatpush.msra.mxu0 %v639
    %701 = vmatpush.msra.mxu0 %v638
    %702 = vmatpush.msra.mxu0 %v637
    %703 = vmatpush.msra.mxu0 %v636
    %704 = vmatpush.msra.mxu0 %v635
    %705 = vmatpush.msra.mxu0 %v634
    %706 = vmatmul.f32.gmra.mxu0 %v616
    %v707 = vpop.f32.mrf.mxu0
    %v708 = vadd.f32 %v688, %v707
    %709 = vdwg.mxu0
    %710 = vmatpush.msra.mxu0 %v665
    %711 = vmatpush.msra.mxu0 %v664
    %712 = vmatpush.msra.mxu0 %v663
    %713 = vmatpush.msra.mxu0 %v662
    %714 = vmatpush.msra.mxu0 %v661
    %715 = vmatpush.msra.mxu0 %v660
    %716 = vmatpush.msra.mxu0 %v659
    %717 = vmatpush.msra.mxu0 %v658
    %718 = vmatpush.msra.mxu0 %v657
    %719 = vmatpush.msra.mxu0 %v656
    %720 = vmatpush.msra.mxu0 %v655
    %721 = vmatpush.msra.mxu0 %v654
    %722 = vmatpush.msra.mxu0 %v653
    %723 = vmatpush.msra.mxu0 %v652
    %724 = vmatpush.msra.mxu0 %v651
    %725 = vmatpush.msra.mxu0 %v650
    %726 = vmatmul.f32.gmra.mxu0 %v617
    %v727 = vpop.f32.mrf.mxu0
    %v728 = vadd.f32 %v708, %v727
    %729 = vdwg.mxu0
    %730 = vst [vmem:[#allocation11] sm:$0x3] %v728
    %v731 = vld [vmem:[%s6] sm:$0xff]
    %v732 = vld [vmem:[%s6 + $0x8] sm:$0xff]
    %v733 = vld [vmem:[%s6 + $0x10] sm:$0xff]
    %v734 = vld [vmem:[%s6 + $0x18] sm:$0xff]
    %v735 = vld [vmem:[#allocation10] sm:$0xff]
    %v736 = vld [vmem:[#allocation10 + $0x8] sm:$0xff]
    %v737 = vld [vmem:[#allocation10 + $0x10] sm:$0xff]
    %v738 = vld [vmem:[#allocation10 + $0x18] sm:$0xff]
    %v739 = vld [vmem:[#allocation10 + $0x20] sm:$0xff]
    %v740 = vld [vmem:[#allocation10 + $0x28] sm:$0xff]
    %v741 = vld [vmem:[#allocation10 + $0x30] sm:$0xff]
    %v742 = vld [vmem:[#allocation10 + $0x38] sm:$0xff]
    %v743 = vld [vmem:[#allocation10 + $0x40] sm:$0xff]
    %v744 = vld [vmem:[#allocation10 + $0x48] sm:$0xff]
    %v745 = vld [vmem:[#allocation10 + $0x50] sm:$0xff]
    %v746 = vld [vmem:[#allocation10 + $0x58] sm:$0xff]
    %v747 = vld [vmem:[#allocation10 + $0x60] sm:$0xff]
    %v748 = vld [vmem:[#allocation10 + $0x68] sm:$0xff]
    %v749 = vld [vmem:[#allocation10 + $0x70] sm:$0xff]
    %v750 = vld [vmem:[#allocation10 + $0x78] sm:$0xff]
    %v751 = vld [vmem:[#allocation10 + $0x80] sm:$0xf]
    %v752 = vld [vmem:[#allocation10 + $0x88] sm:$0xf]
    %v753 = vld [vmem:[#allocation10 + $0x90] sm:$0xf]
    %v754 = vld [vmem:[#allocation10 + $0x98] sm:$0xf]
    %v755 = vld [vmem:[%s7] sm:$0xff]
    %v756 = vld [vmem:[%s7 + $0x8] sm:$0xff]
    %v757 = vld [vmem:[%s7 + $0x10] sm:$0xff]
    %v758 = vld [vmem:[%s7 + $0x18] sm:$0xff]
    %760 = vset.pattern.permute.xlu0 0
    %761 = vperm.xlu0 %760, %v755
    %v762 = vpop.permute.xlu0 %761
    %765 = vset.pattern.permute.xlu0 0
    %766 = vperm.xlu0 %765, %v756
    %v767 = vpop.permute.xlu0 %766
    %770 = vset.pattern.permute.xlu0 0
    %771 = vperm.xlu0 %770, %v757
    %v772 = vpop.permute.xlu0 %771
    %775 = vset.pattern.permute.xlu0 0
    %776 = vperm.xlu0 %775, %v758
    %v777 = vpop.permute.xlu0 %776
    %vm779 = vcmask 293888
    %v781 = vsel %vm779, %v731, 0
    %v784 = vsel %vm779, %v732, 0
    %v787 = vsel %vm779, %v733, 0
    %v790 = vsel %vm779, %v734, 0
    %vm792 = vcmask 1043456
    %v794 = vsel %vm792, %v751, 0
    %v797 = vsel %vm792, %v752, 0
    %v800 = vsel %vm792, %v753, 0
    %v803 = vsel %vm792, %v754, 0
    %805 = vmatpush.msra.mxu0 0.0
    %806 = vmatpush.msra.mxu0 0.0
    %807 = vmatpush.msra.mxu0 0.0
    %808 = vmatpush.msra.mxu0 0.0
    %809 = vmatpush.msra.mxu0 0.0
    %810 = vmatpush.msra.mxu0 0.0
    %811 = vmatpush.msra.mxu0 0.0
    %812 = vmatpush.msra.mxu0 0.0
    %813 = vmatpush.msra.mxu0 0.0
    %814 = vmatpush.msra.mxu0 0.0
    %815 = vmatpush.msra.mxu0 0.0
    %816 = vmatpush.msra.mxu0 %v794
    %817 = vmatpush.msra.mxu0 %v747
    %818 = vmatpush.msra.mxu0 %v743
    %819 = vmatpush.msra.mxu0 %v739
    %820 = vmatpush.msra.mxu0 %v735
    %821 = vmatmul.f32.gmra.mxu0 %v781
    %v822 = vpop.f32.mrf.mxu0
    %v823 = vadd.f32 %v762, %v822
    %824 = vmatmul.f32.gmra.mxu0 %v784
    %v825 = vpop.f32.mrf.mxu0
    %v826 = vadd.f32 %v767, %v825
    %827 = vmatmul.f32.gmra.mxu0 %v787
    %v828 = vpop.f32.mrf.mxu0
    %v829 = vadd.f32 %v772, %v828
    %830 = vmatmul.f32.gmra.mxu0 %v790
    %v831 = vpop.f32.mrf.mxu0
    %v832 = vadd.f32 %v777, %v831
    %833 = vdwg.mxu0
    %834 = vmatpush.msra.mxu0 0.0
    %835 = vmatpush.msra.mxu0 0.0
    %836 = vmatpush.msra.mxu0 0.0
    %837 = vmatpush.msra.mxu0 0.0
    %838 = vmatpush.msra.mxu0 0.0
    %839 = vmatpush.msra.mxu0 0.0
    %840 = vmatpush.msra.mxu0 0.0
    %841 = vmatpush.msra.mxu0 0.0
    %842 = vmatpush.msra.mxu0 0.0
    %843 = vmatpush.msra.mxu0 0.0
    %844 = vmatpush.msra.mxu0 0.0
    %845 = vmatpush.msra.mxu0 %v797
    %846 = vmatpush.msra.mxu0 %v748
    %847 = vmatpush.msra.mxu0 %v744
    %848 = vmatpush.msra.mxu0 %v740
    %849 = vmatpush.msra.mxu0 %v736
    %850 = vmatmul.f32.gmra.mxu0 %v781
    %v851 = vpop.f32.mrf.mxu0
    %v852 = vadd.f32 %v762, %v851
    %853 = vmatmul.f32.gmra.mxu0 %v784
    %v854 = vpop.f32.mrf.mxu0
    %v855 = vadd.f32 %v767, %v854
    %856 = vmatmul.f32.gmra.mxu0 %v787
    %v857 = vpop.f32.mrf.mxu0
    %v858 = vadd.f32 %v772, %v857
    %859 = vmatmul.f32.gmra.mxu0 %v790
    %v860 = vpop.f32.mrf.mxu0
    %v861 = vadd.f32 %v777, %v860
    %862 = vdwg.mxu0
    %863 = vmatpush.msra.mxu0 0.0
    %864 = vmatpush.msra.mxu0 0.0
    %865 = vmatpush.msra.mxu0 0.0
    %866 = vmatpush.msra.mxu0 0.0
    %867 = vmatpush.msra.mxu0 0.0
    %868 = vmatpush.msra.mxu0 0.0
    %869 = vmatpush.msra.mxu0 0.0
    %870 = vmatpush.msra.mxu0 0.0
    %871 = vmatpush.msra.mxu0 0.0
    %872 = vmatpush.msra.mxu0 0.0
    %873 = vmatpush.msra.mxu0 0.0
    %874 = vmatpush.msra.mxu0 %v800
    %875 = vmatpush.msra.mxu0 %v749
    %876 = vmatpush.msra.mxu0 %v745
    %877 = vmatpush.msra.mxu0 %v741
    %878 = vmatpush.msra.mxu0 %v737
    %879 = vmatmul.f32.gmra.mxu0 %v781
    %v880 = vpop.f32.mrf.mxu0
    %v881 = vadd.f32 %v762, %v880
    %882 = vmatmul.f32.gmra.mxu0 %v784
    %v883 = vpop.f32.mrf.mxu0
    %v884 = vadd.f32 %v767, %v883
    %885 = vmatmul.f32.gmra.mxu0 %v787
    %v886 = vpop.f32.mrf.mxu0
    %v887 = vadd.f32 %v772, %v886
    %888 = vmatmul.f32.gmra.mxu0 %v790
    %v889 = vpop.f32.mrf.mxu0
    %v890 = vadd.f32 %v777, %v889
    %891 = vdwg.mxu0
    %892 = vmatpush.msra.mxu0 0.0
    %893 = vmatpush.msra.mxu0 0.0
    %894 = vmatpush.msra.mxu0 0.0
    %895 = vmatpush.msra.mxu0 0.0
    %896 = vmatpush.msra.mxu0 0.0
    %897 = vmatpush.msra.mxu0 0.0
    %898 = vmatpush.msra.mxu0 0.0
    %899 = vmatpush.msra.mxu0 0.0
    %900 = vmatpush.msra.mxu0 0.0
    %901 = vmatpush.msra.mxu0 0.0
    %902 = vmatpush.msra.mxu0 0.0
    %903 = vmatpush.msra.mxu0 %v803
    %904 = vmatpush.msra.mxu0 %v750
    %905 = vmatpush.msra.mxu0 %v746
    %906 = vmatpush.msra.mxu0 %v742
    %907 = vmatpush.msra.mxu0 %v738
    %908 = vmatmul.f32.gmra.mxu0 %v781
    %v909 = vpop.f32.mrf.mxu0
    %v910 = vadd.f32 %v762, %v909
    %911 = vmatmul.f32.gmra.mxu0 %v784
    %v912 = vpop.f32.mrf.mxu0
    %v913 = vadd.f32 %v767, %v912
    %914 = vmatmul.f32.gmra.mxu0 %v787
    %v915 = vpop.f32.mrf.mxu0
    %v916 = vadd.f32 %v772, %v915
    %917 = vmatmul.f32.gmra.mxu0 %v790
    %v918 = vpop.f32.mrf.mxu0
    %v919 = vadd.f32 %v777, %v918
    %920 = vdwg.mxu0
    %921 = vst [vmem:[#allocation12] sm:$0xff] %v823
    %922 = vst [vmem:[#allocation12 + $0x8] sm:$0xff] %v852
    %923 = vst [vmem:[#allocation12 + $0x10] sm:$0xff] %v881
    %924 = vst [vmem:[#allocation12 + $0x18] sm:$0xff] %v910
    %925 = vst [vmem:[#allocation12 + $0x20] sm:$0xff] %v826
    %926 = vst [vmem:[#allocation12 + $0x28] sm:$0xff] %v855
    %927 = vst [vmem:[#allocation12 + $0x30] sm:$0xff] %v884
    %928 = vst [vmem:[#allocation12 + $0x38] sm:$0xff] %v913
    %929 = vst [vmem:[#allocation12 + $0x40] sm:$0xff] %v829
    %930 = vst [vmem:[#allocation12 + $0x48] sm:$0xff] %v858
    %931 = vst [vmem:[#allocation12 + $0x50] sm:$0xff] %v887
    %932 = vst [vmem:[#allocation12 + $0x58] sm:$0xff] %v916
    %933 = vst [vmem:[#allocation12 + $0x60] sm:$0xff] %v832
    %934 = vst [vmem:[#allocation12 + $0x68] sm:$0xff] %v861
    %935 = vst [vmem:[#allocation12 + $0x70] sm:$0xff] %v890
    %936 = vst [vmem:[#allocation12 + $0x78] sm:$0xff] %v919
    // Predicated region
    $region54: #{tpu_custom_call.1} parent=1 // pred_check
      _
    $region55: #{tpu_custom_call.1} parent=1 // pred_check_branch
      %938 = sbr.rel (0) target = $region57
    $region56: #{tpu_custom_call.1} parent=1 // pred_region
      %940 = vsyncadd [#allocation4], 0
      %s942 = sshll.u32 [#allocation11], 4
      %s943 = int_to_ptr.vmem [resolvable:$true] %s942
      %s944 = sshll.u32 %s8, 4
      %s945 = int_to_ptr.hbm [resolvable:$true] %s944
      %947 = dma.vmem_to_hbm [thread:$0]  %s943, 32, %s945, [#allocation4]
    $region57: #{tpu_custom_call.1} parent=1 // pred_fallthru
      _
    // Predicated region
    $region58: #{tpu_custom_call.1} parent=1 // pred_check
      _
    $region59: #{tpu_custom_call.1} parent=1 // pred_check_branch
      %949 = sbr.rel (0) target = $region61
    $region60: #{tpu_custom_call.1} parent=1 // pred_region
      %951 = vsyncadd [#allocation13], 0
      %s952 = sshll.u32 [#allocation12], 4
      %s953 = int_to_ptr.vmem [resolvable:$true] %s952
      %s954 = sshll.u32 %s9, 4
      %s955 = int_to_ptr.hbm [resolvable:$true] %s954
      %960 = dma.vmem_to_hbm [thread:$0]  %s953, 2048, %s955, [#allocation13], 512, 512, 32
    $region61: #{tpu_custom_call.1} parent=1 // pred_fallthru
      _
    // Predicated region
    $region62: #{tpu_custom_call.1} parent=1 // pred_check
      _
    $region63: #{tpu_custom_call.1} parent=1 // pred_check_branch
      %962 = sbr.rel (0) target = $region65
    $region64: #{tpu_custom_call.1} parent=1 // pred_region
      %964 = dma.done [#allocation4], 32
    $region65: #{tpu_custom_call.1} parent=1 // pred_fallthru
      _
    // Predicated region
    $region66: #{tpu_custom_call.1} parent=1 // pred_check
      _
    $region67: #{tpu_custom_call.1} parent=1 // pred_check_branch
      %966 = sbr.rel (0) target = $region69
    $region68: #{tpu_custom_call.1} parent=1 // pred_region
      %968 = dma.done [#allocation13], 2048
    $region69: #{tpu_custom_call.1} parent=1 // pred_fallthru
      _
    %969 = vsyncpa [#allocation3], 1
    %970 = vsyncpa [#allocation6], 1
    %971 = vsyncpa [#allocation9], 1
    %972 = vsyncpa [#allocation4], 1
    %973 = vsyncpa [#allocation13], 1

</llo_original>
